<compile_context>
chip_gen: v7x
topology: tpu7x:2x2x1
jax: 0.10.0
libtpu: 0.0.40
codegen_flags: <defaults>
</compile_context>

<pallas_src>
import functools

import jax
import jax.numpy as jnp
from jax import lax
from jax.experimental import pallas as pl
from jax.experimental.pallas import tpu as pltpu

PAD_TOKEN_ID = 0  # deterministic synthetic config value (config.pad_token_id)

# Per-buffer weight-block budget (double-buffered by the pipeline).  6 MiB/buf
# keeps the working set inside v5e's 16 MiB scoped default and well inside the
# 32 MiB scoped default on v6e/v7x (v7x physical VMEM is only 64 MiB).
_W_BLOCK_BUDGET_BYTES = 6 * 1024 * 1024
_VMEM_LIMIT_BYTES = 32 * 1024 * 1024


# -------------------------- path 1: BertPooler ---------------------------- #
def _bert_pooler_kernel_fullk(h0_ref, w_ref, b_ref, o_ref):
    # Full-K weight block: single matmul + fp32 epilogue, no scratch, no pl.when.
    # w_ref is (tn, H_in) in the native nn.Linear layout; contract dim 1 x dim 1.
    y = lax.dot_general(h0_ref[...], w_ref[...],
                        dimension_numbers=(((1,), (1,)), ((), ())),
                        preferred_element_type=jnp.float32)
    y = y + b_ref[...].astype(jnp.float32)
    o_ref[...] = jnp.tanh(y).astype(o_ref.dtype)


def _bert_pooler_kernel_ktiled(h0_ref, w_ref, b_ref, o_ref, acc_ref):
    # Fallback when a full-K weight block would not fit the VMEM budget.
    k = pl.program_id(1)

    @pl.when(k == 0)
    def _():
        acc_ref[...] = jnp.zeros_like(acc_ref)

    acc_ref[...] += lax.dot_general(h0_ref[...], w_ref[...],
                                    dimension_numbers=(((1,), (1,)), ((), ())),
                                    preferred_element_type=jnp.float32)

    @pl.when(k == pl.num_programs(1) - 1)
    def _():
        y = acc_ref[...] + b_ref[...].astype(jnp.float32)
        o_ref[...] = jnp.tanh(y).astype(o_ref.dtype)


def _pick_tile(dim, cap):
    """Largest tile dividing `dim` that is a multiple of 128 and <= cap.

    If dim itself fits the cap (or cannot be cleanly 128-tiled) the full dim is
    used (full-extent blocks are always legal)."""
    if dim <= cap or dim % 128 != 0:
        return dim
    best = 128
    t = 128
    while t <= cap:
        if dim % t == 0:
            best = t
        t += 128
    return best


def bert_pooler(last_hidden_state, weight, bias):
    """tanh(last_hidden_state[:, 0] @ W.T + b); nn.Linear weight is (H_out, H_in)."""
    B, S, H_in = last_hidden_state.shape
    H_out, _ = weight.shape

    # Slice token 0 at the XLA level: only B*H_in elements reach the kernel,
    # never the full [B, S, H] tensor.
    h0 = last_hidden_state[:, 0, :]
    b2d = bias.reshape(1, H_out)

    itemsize = jnp.dtype(weight.dtype).itemsize

    # Prefer collapsing the contraction axis entirely (tk == H_in).
    tk = H_in
    tn_cap = max(128, _W_BLOCK_BUDGET_BYTES // (tk * itemsize))
    tn = _pick_tile(H_out, tn_cap)
    # Keep >= 2 N-tiles when H_out allows it so v7x megacore can split the
    # weight stream across its two TensorCores.
    if tn == H_out and H_out % 256 == 0:
        tn = H_out // 2

    compiler_params = pltpu.CompilerParams(
        dimension_semantics=("parallel", "arbitrary"),
        vmem_limit_bytes=_VMEM_LIMIT_BYTES)

    if tn * tk * itemsize <= _W_BLOCK_BUDGET_BYTES or H_in % 128 != 0:
        # --- single-K path: grid = (N tiles,), no accumulator scratch ---
        grid = (H_out // tn,)
        return pl.pallas_call(
            _bert_pooler_kernel_fullk,
            out_shape=jax.ShapeDtypeStruct((B, H_out), last_hidden_state.dtype),
            grid=grid,
            in_specs=[
                pl.BlockSpec((B, H_in), lambda n: (0, 0)),
                pl.BlockSpec((tn, H_in), lambda n: (n, 0)),   # native (H_out, H_in) layout
                pl.BlockSpec((1, tn), lambda n: (0, n)),
            ],
            out_specs=pl.BlockSpec((B, tn), lambda n: (0, n)),
            compiler_params=pltpu.CompilerParams(
                dimension_semantics=("parallel",),
                vmem_limit_bytes=_VMEM_LIMIT_BYTES),
        )(h0, weight, b2d)

    # --- fallback: K-tiled reduction with fp32 accumulator ---
    tk = _pick_tile(H_in, max(128, _W_BLOCK_BUDGET_BYTES // (tn * itemsize)))
    grid = (H_out // tn, H_in // tk)
    return pl.pallas_call(
        _bert_pooler_kernel_ktiled,
        out_shape=jax.ShapeDtypeStruct((B, H_out), last_hidden_state.dtype),
        grid=grid,
        in_specs=[
            pl.BlockSpec((B, tk), lambda n, k: (0, k)),
            pl.BlockSpec((tn, tk), lambda n, k: (n, k)),      # native layout
            pl.BlockSpec((1, tn), lambda n, k: (0, n)),
        ],
        out_specs=pl.BlockSpec((B, tn), lambda n, k: (0, n)),
        scratch_shapes=[pltpu.VMEM((B, tn), jnp.float32)],
        compiler_params=compiler_params,
    )(h0, weight, b2d)


# --------------------- path 2: causal-LM last-token pooling --------------- #
def _causal_gather_kernel(pos_ref, h_hbm_ref, o_ref, buf_ref, copy_sem, *, batch):
    # Issue all B row gathers concurrently (data-dependent HBM->VMEM DMAs),
    # then wait and emit one lane/sublane-dense (B, H) store.
    copies = []
    for b in range(batch):
        p = pos_ref[b]
        cp = pltpu.make_async_copy(
            h_hbm_ref.at[b, pl.ds(p, 1), :],     # (1, H) row at the last non-pad token
            buf_ref.at[pl.ds(b, 1), :],          # (1, H) slot in the VMEM slab
            copy_sem.at[b])
        cp.start()
        copies.append(cp)
    for cp in copies:
        cp.wait()
    o_ref[...] = buf_ref[...]


def causal_pool(input_ids, last_hidden_state, pad_token_id=PAD_TOKEN_ID):
    B, S, H = last_hidden_state.shape
    # sequence_lengths = (input_ids != pad_token_id).sum(dim=1) - 1  (tiny int op, plain JAX)
    seq_pos = jnp.sum((input_ids != pad_token_id).astype(jnp.int32), axis=1) - 1
    # Match PyTorch negative-index semantics: an all-pad row gives -1, which
    # torch maps to the last token.  Also keeps the gather DMA in-bounds
    # (there is no runtime OOB check on TPU).
    seq_pos = jnp.where(seq_pos < 0, seq_pos + S, seq_pos).astype(jnp.int32)

    grid_spec = pltpu.PrefetchScalarGridSpec(
        num_scalar_prefetch=1,
        grid=(1,),                                    # single step: all DMAs in flight together
        in_specs=[pl.BlockSpec(memory_space=pl.ANY)], # last_hidden_state stays in HBM
        out_specs=pl.BlockSpec((B, H), lambda i, pos: (0, 0)),
        scratch_shapes=[pltpu.VMEM((B, H), last_hidden_state.dtype),
                        pltpu.SemaphoreType.DMA((B,))],
    )
    return pl.pallas_call(
        functools.partial(_causal_gather_kernel, batch=B),
        out_shape=jax.ShapeDtypeStruct((B, H), last_hidden_state.dtype),
        grid_spec=grid_spec,
        compiler_params=pltpu.CompilerParams(
            dimension_semantics=("arbitrary",)),
    )(seq_pos, last_hidden_state)


# ------------------------------- dispatch --------------------------------- #
def omnigenome_pooling_forward(inputs, last_hidden_state, *, is_causal_lm,
                               pooler_weight=None, pooler_bias=None,
                               pad_token_id=PAD_TOKEN_ID):
    """Mirrors OmniGenomePooling.forward for dict / tuple / array `inputs`."""
    if isinstance(inputs, tuple):
        input_ids = inputs[0]
    elif isinstance(inputs, dict):
        input_ids = inputs["input_ids"]
    else:
        arr = inputs
        if arr.ndim == 3 and arr.shape[1] == 2:
            input_ids = arr[:, 0]
        elif arr.ndim == 3:
            input_ids = arr[0]
        else:
            input_ids = arr  # 2D [B, S]
    # attention_mask is extracted but unused by the reference forward as well.
    if is_causal_lm:
        return causal_pool(input_ids.astype(jnp.int32), last_hidden_state,
                           pad_token_id=pad_token_id)
    else:
        return bert_pooler(last_hidden_state, pooler_weight, pooler_bias)


if __name__ == "__main__":
    key = jax.random.PRNGKey(0)
    B, S, H = 2, 8, 32
    k1, k2, k3, k4 = jax.random.split(key, 4)

    last_hidden_state = jax.random.normal(k1, (B, S, H), dtype=jnp.float32)
    # deterministic synthetic BertPooler.dense parameters (Linear H -> H)
    pooler_weight = 0.02 * jax.random.normal(k2, (H, H), dtype=jnp.float32)
    pooler_bias = 0.02 * jax.random.normal(k3, (H,), dtype=jnp.float32)

    # input_ids with trailing padding (pad_token_id = 0)
    lengths = jnp.array([5, 8])
    pos = jnp.arange(S)[None, :]
    raw = jax.random.randint(k4, (B, S), 1, 10)
    input_ids = jnp.where(pos < lengths[:, None], raw, PAD_TOKEN_ID).astype(jnp.int32)

    # --- path 1: non-causal-LM config -> BertPooler ---
    pooled = omnigenome_pooling_forward(
        {"input_ids": input_ids}, last_hidden_state,
        is_causal_lm=False, pooler_weight=pooler_weight, pooler_bias=pooler_bias)
    jax.block_until_ready(pooled)
    ref1 = jnp.tanh(last_hidden_state[:, 0, :] @ pooler_weight.T + pooler_bias)
    assert pooled.shape == (B, H)
    assert jnp.allclose(pooled, ref1, atol=1e-5), "BertPooler path mismatch"

    # --- path 2: causal-LM config -> last non-pad token gather ---
    gathered = omnigenome_pooling_forward(
        (input_ids,), last_hidden_state, is_causal_lm=True)
    jax.block_until_ready(gathered)
    seq_len = jnp.sum(input_ids != PAD_TOKEN_ID, axis=1) - 1
    ref2 = last_hidden_state[jnp.arange(B), seq_len]
    assert gathered.shape == (B, H)
    assert jnp.allclose(gathered, ref2, atol=1e-5), "Causal-LM path mismatch"

    # --- path 2 edge case: a fully-padded row -> last token (torch [-1] semantics) ---
    input_ids_allpad = input_ids.at[1, :].set(PAD_TOKEN_ID)
    gathered_ap = omnigenome_pooling_forward(
        {"input_ids": input_ids_allpad}, last_hidden_state, is_causal_lm=True)
    jax.block_until_ready(gathered_ap)
    sl = jnp.sum(input_ids_allpad != PAD_TOKEN_ID, axis=1) - 1
    sl = jnp.where(sl < 0, sl + S, sl)
    ref3 = last_hidden_state[jnp.arange(B), sl]
    assert jnp.allclose(gathered_ap, ref3, atol=1e-5), "All-pad row mismatch"

    print("KERNEL_OK")
</pallas_src>

<mosaic_0001>
module attributes {stable_mosaic.version = 11 : i64} {
  func.func @_bert_pooler_kernel_fullk(%arg0: i32, %arg1: memref<2x32xf32, #tpu.memory_space<vmem>>, %arg2: memref<32x32xf32, #tpu.memory_space<vmem>>, %arg3: memref<1x32xf32, #tpu.memory_space<vmem>>, %arg4: memref<2x32xf32, #tpu.memory_space<vmem>>) attributes {dimension_semantics = [#tpu.dimension_semantics<parallel>], iteration_bounds = array<i64: 1>, scalar_prefetch = 0 : i64, scratch_operands = 0 : i64, tpu.core_type = #tpu.core_type<tc>, window_params = [{pipeline_mode = #tpu.pipeline_mode<synchronous>, transform_indices = @transform_0, window_bounds = array<i64: 2, 32>}, {transform_indices = @transform_1, window_bounds = array<i64: 32, 32>}, {transform_indices = @transform_2, window_bounds = array<i64: 1, 32>}, {transform_indices = @transform_3, window_bounds = array<i64: 2, 32>}]} {
    %c0 = arith.constant 0 : index
    %c0_0 = arith.constant 0 : index
    %0 = vector.load %arg1[%c0, %c0_0] : memref<2x32xf32, #tpu.memory_space<vmem>>, vector<2x32xf32>
    %c0_1 = arith.constant 0 : index
    %c0_2 = arith.constant 0 : index
    %1 = vector.load %arg2[%c0_1, %c0_2] : memref<32x32xf32, #tpu.memory_space<vmem>>, vector<32x32xf32>
    %cst = arith.constant dense<0.000000e+00> : vector<2x32xf32>
    %2 = tpu.matmul %0, %1, %cst {dimension_numbers = #tpu.dot_dimension_numbers<[1], [1], [0], [0], [0, 0, 1, 0], [], []>} : vector<2x32xf32>, vector<32x32xf32>, vector<2x32xf32> -> vector<2x32xf32>
    %c0_3 = arith.constant 0 : index
    %c0_4 = arith.constant 0 : index
    %3 = vector.load %arg3[%c0_3, %c0_4] : memref<1x32xf32, #tpu.memory_space<vmem>>, vector<1x32xf32>
    %4 = vector.broadcast %3 : vector<1x32xf32> to vector<2x32xf32>
    %5 = arith.addf %2, %4 : vector<2x32xf32>
    %6 = math.tanh %5 : vector<2x32xf32>
    %c0_5 = arith.constant 0 : index
    %c0_6 = arith.constant 0 : index
    %7 = vector.load %arg4[%c0_5, %c0_6] : memref<2x32xf32, #tpu.memory_space<vmem>>, vector<2x32xf32>
    tpu.vector_store %arg4[%c0_5, %c0_6], %6 {strides = array<i32>} : memref<2x32xf32, #tpu.memory_space<vmem>>, vector<2x32xf32>,
    return
  }
  func.func @transform_0(%arg0: i32) -> (i32, i32) {
    %c0_i32 = arith.constant 0 : i32
    %c0_i32_0 = arith.constant 0 : i32
    %c0_i32_1 = arith.constant 0 : i32
    return %c0_i32, %c0_i32_0 : i32, i32
  }
  func.func @transform_1(%arg0: i32) -> (i32, i32) {
    %c0_i32 = arith.constant 0 : i32
    %c0_i32_0 = arith.constant 0 : i32
    return %arg0, %c0_i32 : i32, i32
  }
  func.func @transform_2(%arg0: i32) -> (i32, i32) {
    %c0_i32 = arith.constant 0 : i32
    %c0_i32_0 = arith.constant 0 : i32
    return %c0_i32, %arg0 : i32, i32
  }
  func.func @transform_3(%arg0: i32) -> (i32, i32) {
    %c0_i32 = arith.constant 0 : i32
    %c0_i32_0 = arith.constant 0 : i32
    return %c0_i32, %arg0 : i32, i32
  }
}

</mosaic_0001>

<llo_original>
// kernel: tpu_custom_call.1
$region0: #{tpu_custom_call.1}
  #allocation0 [shape = 'u32[]', space=smem, size = 0x4, offset = 0x4, fixed_abs, tag = 'smem constant byte address 0x4 - core index']
  #allocation1 [shape = 'u32[144,128]{1,0:T(1,128)}', space=vmem, size = 0x12000, scoped, tag = 'internal scratch']
  %s0 = inlined_call_operand.hbm [shape: f32[2,32], index: 0, kind: input, shape index: {}]
  %s1 = inlined_call_operand.hbm [shape: f32[32,32], index: 1, kind: input, shape index: {}]
  %s2 = inlined_call_operand.vmem [shape: f32[1,32], index: 2, kind: input, shape index: {}]
  %s3 = inlined_call_operand.hbm [shape: f32[2,32], index: 3, kind: output, shape index: {}]
  %s4 = sld [smem:[#allocation0]]
  $region30: #{tpu_custom_call.1} parent=0
    _
  %s6 = ssub.s32 1, %s4
  %s7 = scalar_select 0, %s6, %s4
  $region1: #{tpu_custom_call.1} parent=0
    #allocation2 [shape = 'u8[1024]{0}', space=vmem, size = 0x400, scoped, tag = 'input window, operand 0, single buffered']
    #allocation3 [shape = 's32[1]{0}', space=sflag, size = 0x4, scoped, tag = 'scoped memory for tpu_custom_call.1']
    #allocation4 [shape = 's32[1]{0}', space=sflag, size = 0x4, scoped, tag = 'scoped memory for tpu_custom_call.1']
    #allocation5 [shape = 'u8[16384]{0}', space=vmem, size = 0x4000, scoped, tag = 'input window, operand 1, single buffered']
    #allocation6 [shape = 's32[1]{0}', space=sflag, size = 0x4, scoped, tag = 'scoped memory for tpu_custom_call.1']
    #allocation7 [shape = 'u8[1024]{0}', space=vmem, size = 0x400, scoped, tag = 'output window, operand 0, single buffered']
    %8 = vsyncpa [#allocation3], 0
    %9 = vsyncpa [#allocation6], 0
    %10 = vsyncpa [#allocation4], 0
    // Predicated region
    $region2: #{tpu_custom_call.1} parent=1 // pred_check
      _
    $region3: #{tpu_custom_call.1} parent=1 // pred_check_branch
      %12 = sbr.rel (0) target = $region5
    $region4: #{tpu_custom_call.1} parent=1 // pred_region
      %s14 = ssub.s32 32, 32
      %15 = vsyncadd [#allocation3], %s14
      %s17 = sshll.u32 [#allocation2], 4
      %s18 = int_to_ptr.vmem [resolvable:$true] %s17
      %20 = dma.hbm_to_vmem [thread:$0]  %s0, 32, %s18, [#allocation3]
    $region5: #{tpu_custom_call.1} parent=1 // pred_fallthru
      _
    // Predicated region
    $region6: #{tpu_custom_call.1} parent=1 // pred_check
      _
    $region7: #{tpu_custom_call.1} parent=1 // pred_check_branch
      %22 = sbr.rel (0) target = $region9
    $region8: #{tpu_custom_call.1} parent=1 // pred_region
      %s24 = ssub.s32 512, 512
      %25 = vsyncadd [#allocation6], %s24
      %s26 = sshll.u32 [#allocation5], 4
      %s27 = int_to_ptr.vmem [resolvable:$true] %s26
      %32 = dma.hbm_to_vmem [thread:$0]  %s1, 512, %s27, [#allocation6], 128, 128, 8
    $region9: #{tpu_custom_call.1} parent=1 // pred_fallthru
      _
    // Predicated region
    $region10: #{tpu_custom_call.1} parent=1 // pred_check
      _
    $region11: #{tpu_custom_call.1} parent=1 // pred_check_branch
      %34 = sbr.rel (0) target = $region13
    $region12: #{tpu_custom_call.1} parent=1 // pred_region
      _
    $region13: #{tpu_custom_call.1} parent=1 // pred_fallthru
      _
    // Predicated region
    $region14: #{tpu_custom_call.1} parent=1 // pred_check
      _
    $region15: #{tpu_custom_call.1} parent=1 // pred_check_branch
      %36 = sbr.rel (0) target = $region17
    $region16: #{tpu_custom_call.1} parent=1 // pred_region
      %37 = dma.done [#allocation3], 32
    $region17: #{tpu_custom_call.1} parent=1 // pred_fallthru
      _
    // Predicated region
    $region18: #{tpu_custom_call.1} parent=1 // pred_check
      _
    $region19: #{tpu_custom_call.1} parent=1 // pred_check_branch
      %39 = sbr.rel (0) target = $region21
    $region20: #{tpu_custom_call.1} parent=1 // pred_region
      %40 = dma.done [#allocation6], 512
    $region21: #{tpu_custom_call.1} parent=1 // pred_fallthru
      _
    %v41 = vld [vmem:[#allocation2] sm:$0x3]
    %v42 = vld [vmem:[#allocation5] sm:$0xff]
    %v43 = vld [vmem:[#allocation5 + $0x8] sm:$0xff]
    %v44 = vld [vmem:[#allocation5 + $0x10] sm:$0xff]
    %v45 = vld [vmem:[#allocation5 + $0x18] sm:$0xff]
    %v46 = vld [vmem:[%s2] sm:$0x1]
    %v48 = vlaneseq
    %v49 = vshrl.u32 %v48, 7
    %v50 = vsub.s32 0, %v49
    %v51 = vrot.slane %v46, %v50
    %vm53 = vcmask 261120
    %v55 = vsel %vm53, %v41, 0
    %v58 = vsel %vm53, %v42, 0
    %v61 = vsel %vm53, %v43, 0
    %v64 = vsel %vm53, %v44, 0
    %v67 = vsel %vm53, %v45, 0
    %69 = vmatprep.subr.mxu0 0.0
    %70 = vmatpush1.xpose.msra.mxu0 %v58
    %71 = vmatprep.subr.mxu0 0.0
    %72 = vmatpush1.xpose.msra.mxu0 %v61
    %73 = vmatprep.subr.mxu0 0.0
    %74 = vmatpush1.xpose.msra.mxu0 %v64
    %75 = vmatprep.subr.mxu0 0.0
    %76 = vmatpush1.xpose.msra.mxu0 %v67
    %77 = vmatprep.subr.mxu0 0.0
    %78 = vmatpush1.xpose.msra.mxu0 0.0
    %79 = vmatprep.subr.mxu0 0.0
    %80 = vmatpush1.xpose.msra.mxu0 0.0
    %81 = vmatprep.subr.mxu0 0.0
    %82 = vmatpush1.xpose.msra.mxu0 0.0
    %83 = vmatprep.subr.mxu0 0.0
    %84 = vmatpush1.xpose.msra.mxu0 0.0
    %85 = vmatprep.subr.mxu0 0.0
    %86 = vmatpush1.xpose.msra.mxu0 0.0
    %87 = vmatprep.subr.mxu0 0.0
    %88 = vmatpush1.xpose.msra.mxu0 0.0
    %89 = vmatprep.subr.mxu0 0.0
    %90 = vmatpush1.xpose.msra.mxu0 0.0
    %91 = vmatprep.subr.mxu0 0.0
    %92 = vmatpush1.xpose.msra.mxu0 0.0
    %93 = vmatprep.subr.mxu0 0.0
    %94 = vmatpush1.xpose.msra.mxu0 0.0
    %95 = vmatprep.subr.mxu0 0.0
    %96 = vmatpush1.xpose.msra.mxu0 0.0
    %97 = vmatprep.subr.mxu0 0.0
    %98 = vmatpush1.xpose.msra.mxu0 0.0
    %99 = vmatprep.subr.mxu0 0.0
    %100 = vmatpush1.xpose.msra.mxu0 0.0
    %101 = vmatprep.subr.mxu0 0.0
    %102 = vmatpush1.xpose.msra.mxu0 0.0
    %103 = vmatprep.subr.mxu0 0.0
    %104 = vmatpush1.xpose.msra.mxu0 0.0
    %105 = vmatprep.subr.mxu0 0.0
    %106 = vmatpush1.xpose.msra.mxu0 0.0
    %107 = vmatprep.subr.mxu0 0.0
    %108 = vmatpush1.xpose.msra.mxu0 0.0
    %109 = vmatprep.subr.mxu0 0.0
    %110 = vmatpush1.xpose.msra.mxu0 0.0
    %111 = vmatprep.subr.mxu0 0.0
    %112 = vmatpush1.xpose.msra.mxu0 0.0
    %113 = vmatprep.subr.mxu0 0.0
    %114 = vmatpush1.xpose.msra.mxu0 0.0
    %115 = vmatprep.subr.mxu0 0.0
    %116 = vmatpush1.xpose.msra.mxu0 0.0
    %117 = vmatprep.subr.mxu0 0.0
    %118 = vmatpush1.xpose.msra.mxu0 0.0
    %119 = vmatprep.subr.mxu0 0.0
    %120 = vmatpush1.xpose.msra.mxu0 0.0
    %121 = vmatprep.subr.mxu0 0.0
    %122 = vmatpush1.xpose.msra.mxu0 0.0
    %123 = vmatprep.subr.mxu0 0.0
    %124 = vmatpush1.xpose.msra.mxu0 0.0
    %125 = vmatprep.subr.mxu0 0.0
    %126 = vmatpush1.xpose.msra.mxu0 0.0
    %127 = vmatprep.subr.mxu0 0.0
    %128 = vmatpush1.xpose.msra.mxu0 0.0
    %129 = vmatprep.subr.mxu0 0.0
    %130 = vmatpush1.xpose.msra.mxu0 0.0
    %131 = vmatprep.subr.mxu0 0.0
    %132 = vmatpush1.xpose.msra.mxu0 0.0
    %133 = vmatprep.mubr.f32.mxu0 0.0
    %134 = vmatmul.mubr.f32.gmra.mrb[0].mxu0 %v55
    %v135 = vpop.f32.mrb[0].mxu0
    %v136 = vadd.f32 %v51, %v135
    %v137 = vpop.f32.mrb[0].mxu0
    %138 = vdwg.mxu0
    %v139 = vtanh.pop %v136
    %vm140 = vcmask 254976
    %141 = vst.msk [vmem:[#allocation7] sm:$0x3] %vm140, %v139
    // Predicated region
    $region22: #{tpu_custom_call.1} parent=1 // pred_check
      _
    $region23: #{tpu_custom_call.1} parent=1 // pred_check_branch
      %143 = sbr.rel (0) target = $region25
    $region24: #{tpu_custom_call.1} parent=1 // pred_region
      %s145 = ssub.s32 32, 32
      %146 = vsyncadd [#allocation4], %s145
      %s148 = sshll.u32 [#allocation7], 4
      %s149 = int_to_ptr.vmem [resolvable:$true] %s148
      %151 = dma.vmem_to_hbm [thread:$0]  %s149, 32, %s3, [#allocation4]
    $region25: #{tpu_custom_call.1} parent=1 // pred_fallthru
      _
    // Predicated region
    $region26: #{tpu_custom_call.1} parent=1 // pred_check
      _
    $region27: #{tpu_custom_call.1} parent=1 // pred_check_branch
      %153 = sbr.rel (0) target = $region29
    $region28: #{tpu_custom_call.1} parent=1 // pred_region
      %154 = dma.done [#allocation4], 32
    $region29: #{tpu_custom_call.1} parent=1 // pred_fallthru
      _
    %155 = vsyncpa [#allocation3], 1
    %156 = vsyncpa [#allocation6], 1
    %157 = vsyncpa [#allocation4], 1

</llo_original>
